<compile_context>
chip_gen: v6e
topology: v6e:2x2x1
jax: 0.10.0
libtpu: 0.0.40
codegen_flags: <defaults>
</compile_context>

<pallas_src>
import functools

import jax
import jax.numpy as jnp
from jax.experimental import pallas as pl
from jax.experimental.pallas import tpu as pltpu


# ------------------------------------------------------------------ kernel --

def _fused_gcn_kernel(masks_ref, adj_ref, x_ref, onehot_ref, wcat_ref,
                      w1_ref, b1_ref, w2_ref, b2_ref, out_ref,
                      *, num_layers, num_clusters, feat_pad):
    """Fused: L x (A_hat@X once, packed per-cluster matmul, relu, mask-select,
    pool) followed by the MLP head. Everything stays resident in VMEM."""
    adj = adj_ref[...]              # (N, N)   bf16
    masks = masks_ref[...]          # (N, C)   f32 one-hot cluster masks
    onehot = onehot_ref[...]        # (G, N)   bf16 graph-pooling one-hot
    x = x_ref[...]                  # (N, FP)  bf16 (zero-padded features)
    num_graphs = onehot.shape[0]

    # Accumulate pooled @ w1 per layer (equivalent to concat-then-matmul).
    hm = jnp.zeros((num_graphs, feat_pad), jnp.float32)

    for t in range(num_layers):
        # Cluster-invariant part, hoisted: (N, N) @ (N, FP) -> (N, FP), once.
        ax = jnp.dot(adj, x, preferred_element_type=jnp.float32)
        # All clusters in one lane-dense matmul: (N, FP) @ (FP, C*FP).
        h = jnp.maximum(
            jnp.dot(ax.astype(jnp.bfloat16), wcat_ref[t],
                    preferred_element_type=jnp.float32), 0.0)
        # Disjoint-mask select into the accumulator (no RMW, no where-chain).
        xf = masks[:, 0:1] * h[:, 0:feat_pad]
        for c in range(1, num_clusters):
            xf = xf + masks[:, c:c + 1] * h[:, c * feat_pad:(c + 1) * feat_pad]
        # global_add_pool for this layer: (G, N) @ (N, FP).
        pooled = jnp.dot(onehot, xf.astype(jnp.bfloat16),
                         preferred_element_type=jnp.float32)
        # First MLP linear, layer-sliced (BN eval scale already folded in w1).
        hm = hm + jnp.dot(pooled.astype(jnp.bfloat16), w1_ref[t],
                          preferred_element_type=jnp.float32)
        x = xf.astype(jnp.bfloat16)

    hm = jnp.maximum(hm + b1_ref[...], 0.0)
    out_ref[...] = (jnp.dot(hm.astype(jnp.bfloat16), w2_ref[...],
                            preferred_element_type=jnp.float32) + b2_ref[...])


def fused_partition_gcn_forward(masks, adj, x0, onehot, wcat, w1p, b1p, w2p, b2):
    """masks: (N,C) f32, adj: (N,N) bf16, x0: (N,FP) bf16, onehot: (G,N) bf16,
    wcat: (L,FP,C*FP) bf16, w1p: (L,FP,FP) bf16, b1p: (1,FP) f32,
    w2p: (FP,O) bf16, b2: (1,O) f32  ->  (G,O) f32."""
    N, C = masks.shape
    FP = x0.shape[1]
    L = wcat.shape[0]
    G = onehot.shape[0]
    O = w2p.shape[1]
    kernel = functools.partial(_fused_gcn_kernel, num_layers=L,
                               num_clusters=C, feat_pad=FP)
    return pl.pallas_call(
        kernel,
        out_shape=jax.ShapeDtypeStruct((G, O), jnp.float32),
        grid_spec=pltpu.PrefetchScalarGridSpec(
            num_scalar_prefetch=0,
            grid=(1,),
            in_specs=[
                pl.BlockSpec((N, C), lambda i: (0, 0)),
                pl.BlockSpec((N, N), lambda i: (0, 0)),
                pl.BlockSpec((N, FP), lambda i: (0, 0)),
                pl.BlockSpec((G, N), lambda i: (0, 0)),
                pl.BlockSpec((L, FP, C * FP), lambda i: (0, 0, 0)),
                pl.BlockSpec((L, FP, FP), lambda i: (0, 0, 0)),
                pl.BlockSpec((1, FP), lambda i: (0, 0)),
                pl.BlockSpec((FP, O), lambda i: (0, 0)),
                pl.BlockSpec((1, O), lambda i: (0, 0)),
            ],
            out_specs=pl.BlockSpec((G, O), lambda i: (0, 0)),
        ),
        compiler_params=pltpu.CompilerParams(
            dimension_semantics=("arbitrary",)),
    )(masks, adj, x0, onehot, wcat, w1p, b1p, w2p, b2)


# --------------------------------------------------------------------- glue --

def _round_up(v, m):
    return -(-v // m) * m


def gcn_norm_dense(edge_index, num_nodes):
    """Dense D^-1/2 (A + I) D^-1/2, matching torch_geometric gcn_norm (improved=False)."""
    src, dst = edge_index[0], edge_index[1]
    A = jnp.zeros((num_nodes, num_nodes), jnp.float32).at[dst, src].add(1.0)
    A = A + jnp.eye(num_nodes, dtype=jnp.float32)
    deg = A.sum(axis=1)
    dinv = jnp.where(deg > 0, 1.0 / jnp.sqrt(deg), 0.0)
    return A * dinv[:, None] * dinv[None, :]


def _glorot(key, shape):
    fan_in, fan_out = shape[-2], shape[-1]
    a = jnp.sqrt(6.0 / (fan_in + fan_out))
    return jax.random.uniform(key, shape, jnp.float32, -a, a)


class PartitionEnhancedGCN:
    """JAX/Pallas re-implementation of Partition_enhanced_GCN (forward only)."""

    def __init__(self, key, in_channels, hidden_channels, out_channels,
                 num_layers, num_clusters, use_batch_norm=False,
                 normalize=True, bias=False):
        assert hidden_channels >= in_channels
        assert normalize and not bias
        # TODO(synk): use_batch_norm=True (per-cluster BatchNorm with
        #             allow_single_element) is not implemented.
        assert not use_batch_norm
        self.in_channels = in_channels
        self.hidden_channels = hidden_channels
        self.out_channels = out_channels
        self.num_layers = num_layers
        self.num_clusters = num_clusters
        # Lane-dense padded feature width (multiple of 128).
        self._fp = _round_up(hidden_channels, 128)

        keys = jax.random.split(key, num_layers + 4)
        # per-layer, per-cluster GCN lin weights: layer 0: (C, in, H); layers>0: (C, H, H)
        self.conv_weights = []
        fin = in_channels
        for t in range(num_layers):
            self.conv_weights.append(
                _glorot(keys[t], (num_clusters, fin, hidden_channels)))
            fin = hidden_channels
        # pool MLP: Linear(H*L, H) -> BN -> ReLU -> Linear(H, out)
        self.w1 = _glorot(keys[num_layers],
                          (hidden_channels * num_layers, hidden_channels))
        self.b1 = jax.random.uniform(keys[num_layers + 1], (1, hidden_channels),
                                     jnp.float32, -0.05, 0.05)
        self.w2 = _glorot(keys[num_layers + 2], (hidden_channels, out_channels))
        self.b2 = jax.random.uniform(keys[num_layers + 3], (1, out_channels),
                                     jnp.float32, -0.05, 0.05)

        (self._wcat, self._w1p, self._b1p, self._w2p) = self._pack_kernel_params()

    def _pack_kernel_params(self):
        """Pad feature dims to 128 lanes, pack per-cluster weights along lanes,
        fold the MLP BatchNorm eval scale into w1/b1, cast MXU inputs to bf16."""
        FP, H, IN = self._fp, self.hidden_channels, self.in_channels
        L, C, O = self.num_layers, self.num_clusters, self.out_channels
        # TODO(synk): training-mode batch statistics of the MLP BatchNorm are
        #             not emulated (eval with freshly-initialized running stats).
        bn_scale = 1.0 / jnp.sqrt(1.0 + 1e-5)

        wcat = jnp.zeros((L, FP, C * FP), jnp.float32)
        for t in range(L):
            fin = IN if t == 0 else H
            for c in range(C):
                wcat = wcat.at[t, :fin, c * FP:c * FP + H].set(
                    self.conv_weights[t][c])

        w1p = jnp.zeros((L, FP, FP), jnp.float32)
        for t in range(L):
            w1p = w1p.at[t, :H, :H].set(self.w1[t * H:(t + 1) * H, :] * bn_scale)
        b1p = jnp.zeros((1, FP), jnp.float32).at[:, :H].set(self.b1 * bn_scale)
        w2p = jnp.zeros((FP, O), jnp.float32).at[:H, :].set(self.w2)

        return (wcat.astype(jnp.bfloat16), w1p.astype(jnp.bfloat16), b1p,
                w2p.astype(jnp.bfloat16))

    def forward(self, data_x, edge_index, batch, num_graphs):
        N = data_x.shape[0]
        feats = data_x[:, 1:].astype(jnp.float32)
        labels = data_x[:, 0].astype(jnp.int32)
        masks = (labels[:, None] ==
                 jnp.arange(self.num_clusters)[None, :]).astype(jnp.float32)
        adj = gcn_norm_dense(edge_index, N).astype(jnp.bfloat16)
        x0 = jnp.zeros((N, self._fp), jnp.float32)
        x0 = x0.at[:, :self.in_channels].set(feats).astype(jnp.bfloat16)
        onehot = (batch[None, :] ==
                  jnp.arange(num_graphs)[:, None]).astype(jnp.bfloat16)
        return fused_partition_gcn_forward(
            masks, adj, x0, onehot, self._wcat, self._w1p, self._b1p,
            self._w2p, self.b2)

    # pure-jnp f32 reference (no Pallas) for correctness check
    def reference(self, data_x, edge_index, batch, num_graphs):
        N = data_x.shape[0]
        feats = data_x[:, 1:].astype(jnp.float32)
        labels = data_x[:, 0].astype(jnp.int32)
        adj = gcn_norm_dense(edge_index, N)
        onehot = (batch[None, :] ==
                  jnp.arange(num_graphs)[:, None]).astype(jnp.float32)
        x = feats
        pooled = []
        for t in range(self.num_layers):
            x2 = jnp.zeros((N, self.hidden_channels), jnp.float32)
            for c in range(self.num_clusters):
                h = adj @ (x @ self.conv_weights[t][c])
                x2 = jnp.where((labels == c)[:, None], jnp.maximum(h, 0.0), x2)
            x = x2
            pooled.append(onehot @ x)
        xc = jnp.concatenate(pooled, axis=1)
        h = xc @ self.w1 + self.b1
        h = jnp.maximum(h * (1.0 / jnp.sqrt(1.0 + 1e-5)), 0.0)
        return h @ self.w2 + self.b2


# --------------------------------------------------------------------- main --

if __name__ == "__main__":
    key = jax.random.PRNGKey(0)
    k_feat, k_lab, k_model = jax.random.split(key, 3)

    N = 32              # nodes
    IN_CH = 4           # node feature channels (data.x has 1 + IN_CH columns)
    HIDDEN = 32
    OUT_CH = 8
    NUM_LAYERS = 2
    NUM_CLUSTERS = 3
    NUM_GRAPHS = 2

    # data.x: column 0 = clustering label, columns 1: = features
    feats = jax.random.normal(k_feat, (N, IN_CH), jnp.float32)
    labels = jax.random.randint(k_lab, (N, 1), 0, NUM_CLUSTERS).astype(jnp.float32)
    data_x = jnp.concatenate([labels, feats], axis=1)           # (N, 1 + IN_CH)

    # deterministic ring graph (both directions)
    src = jnp.arange(N, dtype=jnp.int32)
    dst = (src + 1) % N
    edge_index = jnp.stack([jnp.concatenate([src, dst]),
                            jnp.concatenate([dst, src])], axis=0)  # (2, 2N)

    batch = jnp.concatenate([jnp.zeros(N // 2, jnp.int32),
                             jnp.ones(N - N // 2, jnp.int32)])      # (N,)

    model = PartitionEnhancedGCN(k_model, IN_CH, HIDDEN, OUT_CH,
                                 NUM_LAYERS, NUM_CLUSTERS,
                                 use_batch_norm=False, normalize=True, bias=False)

    out = jax.block_until_ready(model.forward(data_x, edge_index, batch, NUM_GRAPHS))
    ref = model.reference(data_x, edge_index, batch, NUM_GRAPHS)

    assert out.shape == (NUM_GRAPHS, OUT_CH)
    assert jnp.all(jnp.isfinite(out))
    # Kernel runs MXU inputs in bf16 (f32 accumulation); reference is pure f32.
    assert jnp.allclose(out, ref, rtol=1e-1, atol=1e-1), (out, ref)
    print("KERNEL_OK")
</pallas_src>

<mosaic_0001>
module attributes {stable_mosaic.version = 11 : i64} {
  func.func @_fused_gcn_kernel(%arg0: i32, %arg1: memref<32x3xf32, #tpu.memory_space<vmem>>, %arg2: memref<32x32xbf16, #tpu.memory_space<vmem>>, %arg3: memref<32x128xbf16, #tpu.memory_space<vmem>>, %arg4: memref<2x32xbf16, #tpu.memory_space<vmem>>, %arg5: memref<2x128x384xbf16, #tpu.memory_space<vmem>>, %arg6: memref<2x128x128xbf16, #tpu.memory_space<vmem>>, %arg7: memref<1x128xf32, #tpu.memory_space<vmem>>, %arg8: memref<128x8xbf16, #tpu.memory_space<vmem>>, %arg9: memref<1x8xf32, #tpu.memory_space<vmem>>, %arg10: memref<2x8xf32, #tpu.memory_space<vmem>>) attributes {dimension_semantics = [#tpu.dimension_semantics<arbitrary>], iteration_bounds = array<i64: 1>, scalar_prefetch = 0 : i64, scratch_operands = 0 : i64, tpu.core_type = #tpu.core_type<tc>, window_params = [{pipeline_mode = #tpu.pipeline_mode<synchronous>, transform_indices = @transform_0, window_bounds = array<i64: 32, 3>}, {pipeline_mode = #tpu.pipeline_mode<synchronous>, transform_indices = @transform_1, window_bounds = array<i64: 32, 32>}, {pipeline_mode = #tpu.pipeline_mode<synchronous>, transform_indices = @transform_2, window_bounds = array<i64: 32, 128>}, {pipeline_mode = #tpu.pipeline_mode<synchronous>, transform_indices = @transform_3, window_bounds = array<i64: 2, 32>}, {pipeline_mode = #tpu.pipeline_mode<synchronous>, transform_indices = @transform_4, window_bounds = array<i64: 2, 128, 384>}, {pipeline_mode = #tpu.pipeline_mode<synchronous>, transform_indices = @transform_5, window_bounds = array<i64: 2, 128, 128>}, {pipeline_mode = #tpu.pipeline_mode<synchronous>, transform_indices = @transform_6, window_bounds = array<i64: 1, 128>}, {pipeline_mode = #tpu.pipeline_mode<synchronous>, transform_indices = @transform_7, window_bounds = array<i64: 128, 8>}, {pipeline_mode = #tpu.pipeline_mode<synchronous>, transform_indices = @transform_8, window_bounds = array<i64: 1, 8>}, {pipeline_mode = #tpu.pipeline_mode<synchronous>, transform_indices = @transform_9, window_bounds = array<i64: 2, 8>}]} {
    %c0 = arith.constant 0 : index
    %c0_0 = arith.constant 0 : index
    %0 = vector.load %arg2[%c0, %c0_0] : memref<32x32xbf16, #tpu.memory_space<vmem>>, vector<32x32xbf16>
    %c0_1 = arith.constant 0 : index
    %c0_2 = arith.constant 0 : index
    %1 = vector.load %arg1[%c0_1, %c0_2] : memref<32x3xf32, #tpu.memory_space<vmem>>, vector<32x3xf32>
    %c0_3 = arith.constant 0 : index
    %c0_4 = arith.constant 0 : index
    %2 = vector.load %arg4[%c0_3, %c0_4] : memref<2x32xbf16, #tpu.memory_space<vmem>>, vector<2x32xbf16>
    %c0_5 = arith.constant 0 : index
    %c0_6 = arith.constant 0 : index
    %3 = vector.load %arg3[%c0_5, %c0_6] : memref<32x128xbf16, #tpu.memory_space<vmem>>, vector<32x128xbf16>
    %cst = arith.constant 0.000000e+00 : f32
    %4 = vector.broadcast %cst : f32 to vector<2x128xf32>
    %cst_7 = arith.constant dense<0.000000e+00> : vector<32x128xf32>
    %5 = tpu.matmul %0, %3, %cst_7 {dimension_numbers = #tpu.dot_dimension_numbers<[1], [0], [0], [1], [0, 0, 1, 1], [], []>} : vector<32x32xbf16>, vector<32x128xbf16>, vector<32x128xf32> -> vector<32x128xf32>
    %6 = arith.truncf %5 : vector<32x128xf32> to vector<32x128xbf16>
    %c0_8 = arith.constant 0 : index
    %c0_9 = arith.constant 0 : index
    %c0_10 = arith.constant 0 : index
    %7 = vector.load %arg5[%c0_8, %c0_9, %c0_10] : memref<2x128x384xbf16, #tpu.memory_space<vmem>>, vector<1x128x384xbf16>
    %8 = vector.shape_cast %7 : vector<1x128x384xbf16> to vector<128x384xbf16>
    %cst_11 = arith.constant dense<0.000000e+00> : vector<32x384xf32>
    %9 = tpu.matmul %6, %8, %cst_11 {dimension_numbers = #tpu.dot_dimension_numbers<[1], [0], [0], [1], [0, 0, 1, 1], [], []>} : vector<32x128xbf16>, vector<128x384xbf16>, vector<32x384xf32> -> vector<32x384xf32>
    %cst_12 = arith.constant 0.000000e+00 : f32
    %10 = vector.broadcast %cst_12 : f32 to vector<32x384xf32>
    %11 = arith.maximumf %9, %10 : vector<32x384xf32>
    %12 = vector.extract_strided_slice %1 {offsets = [0, 0], sizes = [32, 1], strides = [1, 1]} : vector<32x3xf32> to vector<32x1xf32>
    %13 = vector.extract_strided_slice %11 {offsets = [0, 0], sizes = [32, 128], strides = [1, 1]} : vector<32x384xf32> to vector<32x128xf32>
    %14 = vector.broadcast %12 : vector<32x1xf32> to vector<32x128xf32>
    %15 = arith.mulf %14, %13 : vector<32x128xf32>
    %16 = vector.extract_strided_slice %1 {offsets = [0, 1], sizes = [32, 1], strides = [1, 1]} : vector<32x3xf32> to vector<32x1xf32>
    %17 = vector.extract_strided_slice %11 {offsets = [0, 128], sizes = [32, 128], strides = [1, 1]} : vector<32x384xf32> to vector<32x128xf32>
    %18 = vector.broadcast %16 : vector<32x1xf32> to vector<32x128xf32>
    %19 = arith.mulf %18, %17 : vector<32x128xf32>
    %20 = arith.addf %15, %19 : vector<32x128xf32>
    %21 = vector.extract_strided_slice %1 {offsets = [0, 2], sizes = [32, 1], strides = [1, 1]} : vector<32x3xf32> to vector<32x1xf32>
    %22 = vector.extract_strided_slice %11 {offsets = [0, 256], sizes = [32, 128], strides = [1, 1]} : vector<32x384xf32> to vector<32x128xf32>
    %23 = vector.broadcast %21 : vector<32x1xf32> to vector<32x128xf32>
    %24 = arith.mulf %23, %22 : vector<32x128xf32>
    %25 = arith.addf %20, %24 : vector<32x128xf32>
    %26 = arith.truncf %25 : vector<32x128xf32> to vector<32x128xbf16>
    %cst_13 = arith.constant dense<0.000000e+00> : vector<2x128xf32>
    %27 = tpu.matmul %2, %26, %cst_13 {dimension_numbers = #tpu.dot_dimension_numbers<[1], [0], [0], [1], [0, 0, 1, 1], [], []>} : vector<2x32xbf16>, vector<32x128xbf16>, vector<2x128xf32> -> vector<2x128xf32>
    %28 = arith.truncf %27 : vector<2x128xf32> to vector<2x128xbf16>
    %c0_14 = arith.constant 0 : index
    %c0_15 = arith.constant 0 : index
    %c0_16 = arith.constant 0 : index
    %29 = vector.load %arg6[%c0_14, %c0_15, %c0_16] : memref<2x128x128xbf16, #tpu.memory_space<vmem>>, vector<1x128x128xbf16>
    %30 = vector.shape_cast %29 : vector<1x128x128xbf16> to vector<128x128xbf16>
    %cst_17 = arith.constant dense<0.000000e+00> : vector<2x128xf32>
    %31 = tpu.matmul %28, %30, %cst_17 {dimension_numbers = #tpu.dot_dimension_numbers<[1], [0], [0], [1], [0, 0, 1, 1], [], []>} : vector<2x128xbf16>, vector<128x128xbf16>, vector<2x128xf32> -> vector<2x128xf32>
    %32 = arith.addf %4, %31 : vector<2x128xf32>
    %33 = arith.truncf %25 : vector<32x128xf32> to vector<32x128xbf16>
    %cst_18 = arith.constant dense<0.000000e+00> : vector<32x128xf32>
    %34 = tpu.matmul %0, %33, %cst_18 {dimension_numbers = #tpu.dot_dimension_numbers<[1], [0], [0], [1], [0, 0, 1, 1], [], []>} : vector<32x32xbf16>, vector<32x128xbf16>, vector<32x128xf32> -> vector<32x128xf32>
    %35 = arith.truncf %34 : vector<32x128xf32> to vector<32x128xbf16>
    %c1 = arith.constant 1 : index
    %c0_19 = arith.constant 0 : index
    %c0_20 = arith.constant 0 : index
    %36 = vector.load %arg5[%c1, %c0_19, %c0_20] : memref<2x128x384xbf16, #tpu.memory_space<vmem>>, vector<1x128x384xbf16>
    %37 = vector.shape_cast %36 : vector<1x128x384xbf16> to vector<128x384xbf16>
    %cst_21 = arith.constant dense<0.000000e+00> : vector<32x384xf32>
    %38 = tpu.matmul %35, %37, %cst_21 {dimension_numbers = #tpu.dot_dimension_numbers<[1], [0], [0], [1], [0, 0, 1, 1], [], []>} : vector<32x128xbf16>, vector<128x384xbf16>, vector<32x384xf32> -> vector<32x384xf32>
    %cst_22 = arith.constant 0.000000e+00 : f32
    %39 = vector.broadcast %cst_22 : f32 to vector<32x384xf32>
    %40 = arith.maximumf %38, %39 : vector<32x384xf32>
    %41 = vector.extract_strided_slice %1 {offsets = [0, 0], sizes = [32, 1], strides = [1, 1]} : vector<32x3xf32> to vector<32x1xf32>
    %42 = vector.extract_strided_slice %40 {offsets = [0, 0], sizes = [32, 128], strides = [1, 1]} : vector<32x384xf32> to vector<32x128xf32>
    %43 = vector.broadcast %41 : vector<32x1xf32> to vector<32x128xf32>
    %44 = arith.mulf %43, %42 : vector<32x128xf32>
    %45 = vector.extract_strided_slice %1 {offsets = [0, 1], sizes = [32, 1], strides = [1, 1]} : vector<32x3xf32> to vector<32x1xf32>
    %46 = vector.extract_strided_slice %40 {offsets = [0, 128], sizes = [32, 128], strides = [1, 1]} : vector<32x384xf32> to vector<32x128xf32>
    %47 = vector.broadcast %45 : vector<32x1xf32> to vector<32x128xf32>
    %48 = arith.mulf %47, %46 : vector<32x128xf32>
    %49 = arith.addf %44, %48 : vector<32x128xf32>
    %50 = vector.extract_strided_slice %1 {offsets = [0, 2], sizes = [32, 1], strides = [1, 1]} : vector<32x3xf32> to vector<32x1xf32>
    %51 = vector.extract_strided_slice %40 {offsets = [0, 256], sizes = [32, 128], strides = [1, 1]} : vector<32x384xf32> to vector<32x128xf32>
    %52 = vector.broadcast %50 : vector<32x1xf32> to vector<32x128xf32>
    %53 = arith.mulf %52, %51 : vector<32x128xf32>
    %54 = arith.addf %49, %53 : vector<32x128xf32>
    %55 = arith.truncf %54 : vector<32x128xf32> to vector<32x128xbf16>
    %cst_23 = arith.constant dense<0.000000e+00> : vector<2x128xf32>
    %56 = tpu.matmul %2, %55, %cst_23 {dimension_numbers = #tpu.dot_dimension_numbers<[1], [0], [0], [1], [0, 0, 1, 1], [], []>} : vector<2x32xbf16>, vector<32x128xbf16>, vector<2x128xf32> -> vector<2x128xf32>
    %57 = arith.truncf %56 : vector<2x128xf32> to vector<2x128xbf16>
    %c1_24 = arith.constant 1 : index
    %c0_25 = arith.constant 0 : index
    %c0_26 = arith.constant 0 : index
    %58 = vector.load %arg6[%c1_24, %c0_25, %c0_26] : memref<2x128x128xbf16, #tpu.memory_space<vmem>>, vector<1x128x128xbf16>
    %59 = vector.shape_cast %58 : vector<1x128x128xbf16> to vector<128x128xbf16>
    %cst_27 = arith.constant dense<0.000000e+00> : vector<2x128xf32>
    %60 = tpu.matmul %57, %59, %cst_27 {dimension_numbers = #tpu.dot_dimension_numbers<[1], [0], [0], [1], [0, 0, 1, 1], [], []>} : vector<2x128xbf16>, vector<128x128xbf16>, vector<2x128xf32> -> vector<2x128xf32>
    %61 = arith.addf %32, %60 : vector<2x128xf32>
    %c0_28 = arith.constant 0 : index
    %c0_29 = arith.constant 0 : index
    %62 = vector.load %arg7[%c0_28, %c0_29] : memref<1x128xf32, #tpu.memory_space<vmem>>, vector<1x128xf32>
    %63 = vector.broadcast %62 : vector<1x128xf32> to vector<2x128xf32>
    %64 = arith.addf %61, %63 : vector<2x128xf32>
    %cst_30 = arith.constant 0.000000e+00 : f32
    %65 = vector.broadcast %cst_30 : f32 to vector<2x128xf32>
    %66 = arith.maximumf %64, %65 : vector<2x128xf32>
    %67 = arith.truncf %66 : vector<2x128xf32> to vector<2x128xbf16>
    %c0_31 = arith.constant 0 : index
    %c0_32 = arith.constant 0 : index
    %68 = vector.load %arg8[%c0_31, %c0_32] : memref<128x8xbf16, #tpu.memory_space<vmem>>, vector<128x8xbf16>
    %cst_33 = arith.constant dense<0.000000e+00> : vector<2x8xf32>
    %69 = tpu.matmul %67, %68, %cst_33 {dimension_numbers = #tpu.dot_dimension_numbers<[1], [0], [0], [1], [0, 0, 1, 1], [], []>} : vector<2x128xbf16>, vector<128x8xbf16>, vector<2x8xf32> -> vector<2x8xf32>
    %c0_34 = arith.constant 0 : index
    %c0_35 = arith.constant 0 : index
    %70 = vector.load %arg9[%c0_34, %c0_35] : memref<1x8xf32, #tpu.memory_space<vmem>>, vector<1x8xf32>
    %71 = vector.broadcast %70 : vector<1x8xf32> to vector<2x8xf32>
    %72 = arith.addf %69, %71 : vector<2x8xf32>
    %c0_36 = arith.constant 0 : index
    %c0_37 = arith.constant 0 : index
    %73 = vector.load %arg10[%c0_36, %c0_37] : memref<2x8xf32, #tpu.memory_space<vmem>>, vector<2x8xf32>
    tpu.vector_store %arg10[%c0_36, %c0_37], %72 {strides = array<i32>} : memref<2x8xf32, #tpu.memory_space<vmem>>, vector<2x8xf32>,
    return
  }
  func.func @transform_0(%arg0: i32) -> (i32, i32) {
    %c0_i32 = arith.constant 0 : i32
    %c0_i32_0 = arith.constant 0 : i32
    %c0_i32_1 = arith.constant 0 : i32
    return %c0_i32, %c0_i32_0 : i32, i32
  }
  func.func @transform_1(%arg0: i32) -> (i32, i32) {
    %c0_i32 = arith.constant 0 : i32
    %c0_i32_0 = arith.constant 0 : i32
    %c0_i32_1 = arith.constant 0 : i32
    return %c0_i32, %c0_i32_0 : i32, i32
  }
  func.func @transform_2(%arg0: i32) -> (i32, i32) {
    %c0_i32 = arith.constant 0 : i32
    %c0_i32_0 = arith.constant 0 : i32
    %c0_i32_1 = arith.constant 0 : i32
    return %c0_i32, %c0_i32_0 : i32, i32
  }
  func.func @transform_3(%arg0: i32) -> (i32, i32) {
    %c0_i32 = arith.constant 0 : i32
    %c0_i32_0 = arith.constant 0 : i32
    %c0_i32_1 = arith.constant 0 : i32
    return %c0_i32, %c0_i32_0 : i32, i32
  }
  func.func @transform_4(%arg0: i32) -> (i32, i32, i32) {
    %c0_i32 = arith.constant 0 : i32
    %c0_i32_0 = arith.constant 0 : i32
    %c0_i32_1 = arith.constant 0 : i32
    %c0_i32_2 = arith.constant 0 : i32
    return %c0_i32, %c0_i32_0, %c0_i32_1 : i32, i32, i32
  }
  func.func @transform_5(%arg0: i32) -> (i32, i32, i32) {
    %c0_i32 = arith.constant 0 : i32
    %c0_i32_0 = arith.constant 0 : i32
    %c0_i32_1 = arith.constant 0 : i32
    %c0_i32_2 = arith.constant 0 : i32
    return %c0_i32, %c0_i32_0, %c0_i32_1 : i32, i32, i32
  }
  func.func @transform_6(%arg0: i32) -> (i32, i32) {
    %c0_i32 = arith.constant 0 : i32
    %c0_i32_0 = arith.constant 0 : i32
    %c0_i32_1 = arith.constant 0 : i32
    return %c0_i32, %c0_i32_0 : i32, i32
  }
  func.func @transform_7(%arg0: i32) -> (i32, i32) {
    %c0_i32 = arith.constant 0 : i32
    %c0_i32_0 = arith.constant 0 : i32
    %c0_i32_1 = arith.constant 0 : i32
    return %c0_i32, %c0_i32_0 : i32, i32
  }
  func.func @transform_8(%arg0: i32) -> (i32, i32) {
    %c0_i32 = arith.constant 0 : i32
    %c0_i32_0 = arith.constant 0 : i32
    %c0_i32_1 = arith.constant 0 : i32
    return %c0_i32, %c0_i32_0 : i32, i32
  }
  func.func @transform_9(%arg0: i32) -> (i32, i32) {
    %c0_i32 = arith.constant 0 : i32
    %c0_i32_0 = arith.constant 0 : i32
    %c0_i32_1 = arith.constant 0 : i32
    return %c0_i32, %c0_i32_0 : i32, i32
  }
}

</mosaic_0001>

<llo_original>
// kernel: tpu_custom_call.1
$region0: #{tpu_custom_call.1}
  #allocation0 [shape = 'u32[]', space=smem, size = 0x4, offset = 0x4, fixed_abs, tag = 'smem constant byte address 0x4 - core index']
  #allocation1 [shape = 'u32[144,128]{1,0:T(1,128)}', space=vmem, size = 0x12000, scoped, tag = 'internal scratch']
  %s0 = inlined_call_operand.vmem [shape: f32[32,3], index: 0, kind: input, shape index: {}]
  %s1 = inlined_call_operand.vmem [shape: bf16[32,32], index: 1, kind: input, shape index: {}]
  %s2 = inlined_call_operand.vmem [shape: bf16[32,128], index: 2, kind: input, shape index: {}]
  %s3 = inlined_call_operand.vmem [shape: bf16[2,32], index: 3, kind: input, shape index: {}]
  %s4 = inlined_call_operand.hbm [shape: bf16[2,128,384], index: 4, kind: input, shape index: {}]
  %s5 = inlined_call_operand.hbm [shape: bf16[2,128,128], index: 5, kind: input, shape index: {}]
  %s6 = inlined_call_operand.vmem [shape: f32[1,128], index: 6, kind: input, shape index: {}]
  %s7 = inlined_call_operand.vmem [shape: bf16[128,8], index: 7, kind: input, shape index: {}]
  %s8 = inlined_call_operand.vmem [shape: f32[1,8], index: 8, kind: input, shape index: {}]
  %s9 = inlined_call_operand.hbm [shape: f32[2,8], index: 9, kind: output, shape index: {}]
  %s10 = sld [smem:[#allocation0]]
  $region54: #{tpu_custom_call.1} parent=0
    _
  %s12 = ssub.s32 1, %s10
  %s13 = scalar_select 0, %s12, %s10
  $region1: #{tpu_custom_call.1} parent=0
    #allocation2 [shape = 'u8[196608]{0}', space=vmem, size = 0x30000, scoped, tag = 'input window, operand 4, single buffered']
    #allocation3 [shape = 's32[1]{0}', space=sflag, size = 0x4, scoped, tag = 'scoped memory for tpu_custom_call.1']
    #allocation4 [shape = 's32[1]{0}', space=sflag, size = 0x4, scoped, tag = 'scoped memory for tpu_custom_call.1']
    #allocation5 [shape = 'u8[65536]{0}', space=vmem, size = 0x10000, scoped, tag = 'input window, operand 5, single buffered']
    #allocation6 [shape = 's32[1]{0}', space=sflag, size = 0x4, scoped, tag = 'scoped memory for tpu_custom_call.1']
    #allocation7 [shape = 'u8[1024]{0}', space=vmem, size = 0x400, scoped, tag = 'output window, operand 0, single buffered']
    %14 = vsyncpa [#allocation3], 0
    %15 = vsyncpa [#allocation6], 0
    %16 = vsyncpa [#allocation4], 0
    // Predicated region
    $region2: #{tpu_custom_call.1} parent=1 // pred_check
      _
    $region3: #{tpu_custom_call.1} parent=1 // pred_check_branch
      %18 = sbr.rel (0) target = $region5
    $region4: #{tpu_custom_call.1} parent=1 // pred_region
      _
    $region5: #{tpu_custom_call.1} parent=1 // pred_fallthru
      _
    // Predicated region
    $region6: #{tpu_custom_call.1} parent=1 // pred_check
      _
    $region7: #{tpu_custom_call.1} parent=1 // pred_check_branch
      %20 = sbr.rel (0) target = $region9
    $region8: #{tpu_custom_call.1} parent=1 // pred_region
      _
    $region9: #{tpu_custom_call.1} parent=1 // pred_fallthru
      _
    // Predicated region
    $region10: #{tpu_custom_call.1} parent=1 // pred_check
      _
    $region11: #{tpu_custom_call.1} parent=1 // pred_check_branch
      %22 = sbr.rel (0) target = $region13
    $region12: #{tpu_custom_call.1} parent=1 // pred_region
      _
    $region13: #{tpu_custom_call.1} parent=1 // pred_fallthru
      _
    // Predicated region
    $region14: #{tpu_custom_call.1} parent=1 // pred_check
      _
    $region15: #{tpu_custom_call.1} parent=1 // pred_check_branch
      %24 = sbr.rel (0) target = $region17
    $region16: #{tpu_custom_call.1} parent=1 // pred_region
      _
    $region17: #{tpu_custom_call.1} parent=1 // pred_fallthru
      _
    // Predicated region
    $region18: #{tpu_custom_call.1} parent=1 // pred_check
      _
    $region19: #{tpu_custom_call.1} parent=1 // pred_check_branch
      %26 = sbr.rel (0) target = $region21
    $region20: #{tpu_custom_call.1} parent=1 // pred_region
      %s28 = ssub.s32 6144, 6144
      %29 = vsyncadd [#allocation3], %s28
      %s30 = sshll.u32 [#allocation2], 4
      %s31 = int_to_ptr.vmem [resolvable:$true] %s30
      %36 = dma.hbm_to_vmem [thread:$0]  %s4, 6144, %s31, [#allocation3], 192, 192, 12
    $region21: #{tpu_custom_call.1} parent=1 // pred_fallthru
      _
    // Predicated region
    $region22: #{tpu_custom_call.1} parent=1 // pred_check
      _
    $region23: #{tpu_custom_call.1} parent=1 // pred_check_branch
      %38 = sbr.rel (0) target = $region25
    $region24: #{tpu_custom_call.1} parent=1 // pred_region
      %s40 = ssub.s32 2048, 2048
      %41 = vsyncadd [#allocation6], %s40
      %s42 = sshll.u32 [#allocation5], 4
      %s43 = int_to_ptr.vmem [resolvable:$true] %s42
      %48 = dma.hbm_to_vmem [thread:$0]  %s5, 2048, %s43, [#allocation6], 64, 64, 4
    $region25: #{tpu_custom_call.1} parent=1 // pred_fallthru
      _
    // Predicated region
    $region26: #{tpu_custom_call.1} parent=1 // pred_check
      _
    $region27: #{tpu_custom_call.1} parent=1 // pred_check_branch
      %50 = sbr.rel (0) target = $region29
    $region28: #{tpu_custom_call.1} parent=1 // pred_region
      _
    $region29: #{tpu_custom_call.1} parent=1 // pred_fallthru
      _
    // Predicated region
    $region30: #{tpu_custom_call.1} parent=1 // pred_check
      _
    $region31: #{tpu_custom_call.1} parent=1 // pred_check_branch
      %52 = sbr.rel (0) target = $region33
    $region32: #{tpu_custom_call.1} parent=1 // pred_region
      _
    $region33: #{tpu_custom_call.1} parent=1 // pred_fallthru
      _
    // Predicated region
    $region34: #{tpu_custom_call.1} parent=1 // pred_check
      _
    $region35: #{tpu_custom_call.1} parent=1 // pred_check_branch
      %54 = sbr.rel (0) target = $region37
    $region36: #{tpu_custom_call.1} parent=1 // pred_region
      _
    $region37: #{tpu_custom_call.1} parent=1 // pred_fallthru
      _
    // Predicated region
    $region38: #{tpu_custom_call.1} parent=1 // pred_check
      _
    $region39: #{tpu_custom_call.1} parent=1 // pred_check_branch
      %56 = sbr.rel (0) target = $region41
    $region40: #{tpu_custom_call.1} parent=1 // pred_region
      %57 = dma.done [#allocation3], 6144
    $region41: #{tpu_custom_call.1} parent=1 // pred_fallthru
      _
    // Predicated region
    $region42: #{tpu_custom_call.1} parent=1 // pred_check
      _
    $region43: #{tpu_custom_call.1} parent=1 // pred_check_branch
      %59 = sbr.rel (0) target = $region45
    $region44: #{tpu_custom_call.1} parent=1 // pred_region
      %60 = dma.done [#allocation6], 2048
    $region45: #{tpu_custom_call.1} parent=1 // pred_fallthru
      _
    %v62 = vld [vmem:[%s1] sm:$0xf]
    %v63 = vld [vmem:[%s1 + $0x4] sm:$0xf]
    %v64 = vld [vmem:[%s1 + $0x8] sm:$0xf]
    %v65 = vld [vmem:[%s1 + $0xc] sm:$0xf]
    %v66 = vld [vmem:[%s0] sm:$0xff]
    %v67 = vld [vmem:[%s0 + $0x8] sm:$0xff]
    %v68 = vld [vmem:[%s0 + $0x10] sm:$0xff]
    %v69 = vld [vmem:[%s0 + $0x18] sm:$0xff]
    %v70 = vld [vmem:[%s3] sm:$0x1]
    %v71 = vld [vmem:[%s2] sm:$0xf]
    %v72 = vld [vmem:[%s2 + $0x4] sm:$0xf]
    %v73 = vld [vmem:[%s2 + $0x8] sm:$0xf]
    %v74 = vld [vmem:[%s2 + $0xc] sm:$0xf]
    %v79 = vunpack.c.l.b16 %v62
    %v80 = vunpack.c.l.b16 %v63
    %v81 = vunpack.c.l.b16 %v64
    %v82 = vunpack.c.l.b16 %v65
    %v83 = vpack.c.b16 %v80, %v79
    %v84 = vpack.c.b16 %v82, %v81
    %v89 = vunpack.c.l.b16 %v71
    %v90 = vunpack.c.l.b16 %v72
    %v91 = vunpack.c.l.b16 %v73
    %v92 = vunpack.c.l.b16 %v74
    %v93 = vpack.c.b16 %v90, %v89
    %v94 = vpack.c.b16 %v92, %v91
    %vm97 = vcmask 261120
    %v99 = vsel %vm97, %v83, 0
    %v102 = vsel %vm97, %v84, 0
    %104 = vmatprep.subr.bf16.mxu0 0
    %105 = vmatpush1.bf16.msra.mxu0 0
    %106 = vmatprep.subr.bf16.mxu0 0
    %107 = vmatpush1.bf16.msra.mxu0 0
    %108 = vmatprep.subr.bf16.mxu0 0
    %109 = vmatpush1.bf16.msra.mxu0 0
    %110 = vmatprep.subr.bf16.mxu0 0
    %111 = vmatpush1.bf16.msra.mxu0 0
    %112 = vmatprep.subr.bf16.mxu0 0
    %113 = vmatpush1.bf16.msra.mxu0 0
    %114 = vmatprep.subr.bf16.mxu0 0
    %115 = vmatpush1.bf16.msra.mxu0 0
    %116 = vmatprep.subr.bf16.mxu0 0
    %117 = vmatpush1.bf16.msra.mxu0 %v94
    %118 = vmatprep.subr.bf16.mxu0 0
    %119 = vmatpush1.bf16.msra.mxu0 %v93
    %120 = vmatprep.subr.bf16.mxu0 0
    %121 = vmatpush2.bf16.msra.mxu0 0
    %122 = vmatprep.subr.bf16.mxu0 0
    %123 = vmatpush2.bf16.msra.mxu0 0
    %124 = vmatprep.subr.bf16.mxu0 0
    %125 = vmatpush2.bf16.msra.mxu0 0
    %126 = vmatprep.subr.bf16.mxu0 0
    %127 = vmatpush2.bf16.msra.mxu0 0
    %128 = vmatprep.subr.bf16.mxu0 0
    %129 = vmatpush2.bf16.msra.mxu0 0
    %130 = vmatprep.subr.bf16.mxu0 0
    %131 = vmatpush2.bf16.msra.mxu0 0
    %132 = vmatprep.subr.bf16.mxu0 0
    %133 = vmatpush2.bf16.msra.mxu0 0
    %134 = vmatprep.subr.bf16.mxu0 0
    %135 = vmatpush2.bf16.msra.mxu0 0
    %136 = vmatprep.mubr.bf16.mxu0 0
    %137 = vmatmul.mubr.bf16.gmra.mxu0 %v99
    %v138 = vpop.f32.mrf.mxu0
    %v139 = vadd.f32 0.0, %v138
    %v140 = vpop.f32.mrf.mxu0
    %v141 = vpop.f32.mrf.mxu0
    %v142 = vadd.f32 0.0, %v141
    %v143 = vpop.f32.mrf.mxu0
    %144 = vmatprep.mubr.bf16.mxu0 0
    %145 = vmatmul.mubr.bf16.gmra.mxu0 %v102
    %v146 = vpop.f32.mrf.mxu0
    %v147 = vadd.f32 0.0, %v146
    %v148 = vpop.f32.mrf.mxu0
    %v149 = vpop.f32.mrf.mxu0
    %v150 = vadd.f32 0.0, %v149
    %v151 = vpop.f32.mrf.mxu0
    %152 = vdwg.mxu0
    %v153 = vpack.c.bf16 %v142, %v139
    %v154 = vpack.c.bf16 %v150, %v147
    %v155 = vld [vmem:[#allocation2] sm:$0xff]
    %v156 = vld [vmem:[#allocation2 + $0x8] sm:$0xf]
    %v157 = vld [vmem:[#allocation2 + $0xc] sm:$0xff]
    %v158 = vld [vmem:[#allocation2 + $0x14] sm:$0xf]
    %v159 = vld [vmem:[#allocation2 + $0x18] sm:$0xff]
    %v160 = vld [vmem:[#allocation2 + $0x20] sm:$0xf]
    %v161 = vld [vmem:[#allocation2 + $0x24] sm:$0xff]
    %v162 = vld [vmem:[#allocation2 + $0x2c] sm:$0xf]
    %v163 = vld [vmem:[#allocation2 + $0x30] sm:$0xff]
    %v164 = vld [vmem:[#allocation2 + $0x38] sm:$0xf]
    %v165 = vld [vmem:[#allocation2 + $0x3c] sm:$0xff]
    %v166 = vld [vmem:[#allocation2 + $0x44] sm:$0xf]
    %v167 = vld [vmem:[#allocation2 + $0x48] sm:$0xff]
    %v168 = vld [vmem:[#allocation2 + $0x50] sm:$0xf]
    %v169 = vld [vmem:[#allocation2 + $0x54] sm:$0xff]
    %v170 = vld [vmem:[#allocation2 + $0x5c] sm:$0xf]
    %v171 = vld [vmem:[#allocation2 + $0x60] sm:$0xff]
    %v172 = vld [vmem:[#allocation2 + $0x68] sm:$0xf]
    %v173 = vld [vmem:[#allocation2 + $0x6c] sm:$0xff]
    %v174 = vld [vmem:[#allocation2 + $0x74] sm:$0xf]
    %v175 = vld [vmem:[#allocation2 + $0x78] sm:$0xff]
    %v176 = vld [vmem:[#allocation2 + $0x80] sm:$0xf]
    %v177 = vld [vmem:[#allocation2 + $0x84] sm:$0xff]
    %v178 = vld [vmem:[#allocation2 + $0x8c] sm:$0xf]
    %v179 = vld [vmem:[#allocation2 + $0x90] sm:$0xff]
    %v180 = vld [vmem:[#allocation2 + $0x98] sm:$0xf]
    %v181 = vld [vmem:[#allocation2 + $0x9c] sm:$0xff]
    %v182 = vld [vmem:[#allocation2 + $0xa4] sm:$0xf]
    %v183 = vld [vmem:[#allocation2 + $0xa8] sm:$0xff]
    %v184 = vld [vmem:[#allocation2 + $0xb0] sm:$0xf]
    %v185 = vld [vmem:[#allocation2 + $0xb4] sm:$0xff]
    %v186 = vld [vmem:[#allocation2 + $0xbc] sm:$0xf]
    %v219 = vunpack.c.l.b16 %v155
    %v220 = vunpack.c.h.b16 %v155
    %v221 = vunpack.c.l.b16 %v156
    %v222 = vunpack.c.l.b16 %v157
    %v223 = vunpack.c.h.b16 %v157
    %v224 = vunpack.c.l.b16 %v158
    %v225 = vunpack.c.l.b16 %v159
    %v226 = vunpack.c.h.b16 %v159
    %v227 = vunpack.c.l.b16 %v160
    %v228 = vunpack.c.l.b16 %v161
    %v229 = vunpack.c.h.b16 %v161
    %v230 = vunpack.c.l.b16 %v162
    %v231 = vunpack.c.l.b16 %v163
    %v232 = vunpack.c.h.b16 %v163
    %v233 = vunpack.c.l.b16 %v164
    %v234 = vunpack.c.l.b16 %v165
    %v235 = vunpack.c.h.b16 %v165
    %v236 = vunpack.c.l.b16 %v166
    %v237 = vunpack.c.l.b16 %v167
    %v238 = vunpack.c.h.b16 %v167
    %v239 = vunpack.c.l.b16 %v168
    %v240 = vunpack.c.l.b16 %v169
    %v241 = vunpack.c.h.b16 %v169
    %v242 = vunpack.c.l.b16 %v170
    %v243 = vunpack.c.l.b16 %v171
    %v244 = vunpack.c.h.b16 %v171
    %v245 = vunpack.c.l.b16 %v172
    %v246 = vunpack.c.l.b16 %v173
    %v247 = vunpack.c.h.b16 %v173
    %v248 = vunpack.c.l.b16 %v174
    %v249 = vunpack.c.l.b16 %v175
    %v250 = vunpack.c.h.b16 %v175
    %v251 = vunpack.c.l.b16 %v176
    %v252 = vunpack.c.l.b16 %v177
    %v253 = vunpack.c.h.b16 %v177
    %v254 = vunpack.c.l.b16 %v178
    %v255 = vunpack.c.l.b16 %v179
    %v256 = vunpack.c.h.b16 %v179
    %v257 = vunpack.c.l.b16 %v180
    %v258 = vunpack.c.l.b16 %v181
    %v259 = vunpack.c.h.b16 %v181
    %v260 = vunpack.c.l.b16 %v182
    %v261 = vunpack.c.l.b16 %v183
    %v262 = vunpack.c.h.b16 %v183
    %v263 = vunpack.c.l.b16 %v184
    %v264 = vunpack.c.l.b16 %v185
    %v265 = vunpack.c.h.b16 %v185
    %v266 = vunpack.c.l.b16 %v186
    %v267 = vpack.c.b16 %v222, %v219
    %v268 = vpack.c.b16 %v223, %v220
    %v269 = vpack.c.b16 %v224, %v221
    %v270 = vpack.c.b16 %v228, %v225
    %v271 = vpack.c.b16 %v229, %v226
    %v272 = vpack.c.b16 %v230, %v227
    %v273 = vpack.c.b16 %v234, %v231
    %v274 = vpack.c.b16 %v235, %v232
    %v275 = vpack.c.b16 %v236, %v233
    %v276 = vpack.c.b16 %v240, %v237
    %v277 = vpack.c.b16 %v241, %v238
    %v278 = vpack.c.b16 %v242, %v239
    %v279 = vpack.c.b16 %v246, %v243
    %v280 = vpack.c.b16 %v247, %v244
    %v281 = vpack.c.b16 %v248, %v245
    %v282 = vpack.c.b16 %v252, %v249
    %v283 = vpack.c.b16 %v253, %v250
    %v284 = vpack.c.b16 %v254, %v251
    %v285 = vpack.c.b16 %v258, %v255
    %v286 = vpack.c.b16 %v259, %v256
    %v287 = vpack.c.b16 %v260, %v257
    %v288 = vpack.c.b16 %v264, %v261
    %v289 = vpack.c.b16 %v265, %v262
    %v290 = vpack.c.b16 %v266, %v263
    %315 = vmatprep.subr.bf16.mxu0 %v289
    %316 = vmatpush1.bf16.msra.mxu0 %v288
    %317 = vmatprep.subr.bf16.mxu0 %v286
    %318 = vmatpush1.bf16.msra.mxu0 %v285
    %319 = vmatprep.subr.bf16.mxu0 %v283
    %320 = vmatpush1.bf16.msra.mxu0 %v282
    %321 = vmatprep.subr.bf16.mxu0 %v280
    %322 = vmatpush1.bf16.msra.mxu0 %v279
    %323 = vmatprep.subr.bf16.mxu0 %v277
    %324 = vmatpush1.bf16.msra.mxu0 %v276
    %325 = vmatprep.subr.bf16.mxu0 %v274
    %326 = vmatpush1.bf16.msra.mxu0 %v273
    %327 = vmatprep.subr.bf16.mxu0 %v271
    %328 = vmatpush1.bf16.msra.mxu0 %v270
    %329 = vmatprep.subr.bf16.mxu0 %v268
    %330 = vmatpush1.bf16.msra.mxu0 %v267
    %331 = vmatprep.subr.bf16.mxu0 0
    %332 = vmatpush2.bf16.msra.mxu0 0
    %333 = vmatprep.subr.bf16.mxu0 0
    %334 = vmatpush2.bf16.msra.mxu0 0
    %335 = vmatprep.subr.bf16.mxu0 0
    %336 = vmatpush2.bf16.msra.mxu0 0
    %337 = vmatprep.subr.bf16.mxu0 0
    %338 = vmatpush2.bf16.msra.mxu0 0
    %339 = vmatprep.subr.bf16.mxu0 0
    %340 = vmatpush2.bf16.msra.mxu0 0
    %341 = vmatprep.subr.bf16.mxu0 0
    %342 = vmatpush2.bf16.msra.mxu0 0
    %343 = vmatprep.subr.bf16.mxu0 0
    %344 = vmatpush2.bf16.msra.mxu0 0
    %345 = vmatprep.subr.bf16.mxu0 0
    %346 = vmatpush2.bf16.msra.mxu0 0
    %347 = vmatprep.mubr.bf16.mxu0 0
    %348 = vmatmul.mubr.bf16.gmra.mxu0 %v153
    %v349 = vpop.f32.mrf.mxu0
    %v350 = vadd.f32 0.0, %v349
    %v351 = vpop.f32.mrf.mxu0
    %v352 = vadd.f32 0.0, %v351
    %v353 = vpop.f32.mrf.mxu0
    %v354 = vadd.f32 0.0, %v353
    %v355 = vpop.f32.mrf.mxu0
    %v356 = vadd.f32 0.0, %v355
    %357 = vmatprep.mubr.bf16.mxu0 0
    %358 = vmatmul.mubr.bf16.gmra.mxu0 %v154
    %v359 = vpop.f32.mrf.mxu0
    %v360 = vadd.f32 0.0, %v359
    %v361 = vpop.f32.mrf.mxu0
    %v362 = vadd.f32 0.0, %v361
    %v363 = vpop.f32.mrf.mxu0
    %v364 = vadd.f32 0.0, %v363
    %v365 = vpop.f32.mrf.mxu0
    %v366 = vadd.f32 0.0, %v365
    %367 = vdwg.mxu0
    %368 = vmatprep.subr.bf16.mxu0 0
    %369 = vmatpush1.bf16.msra.mxu0 %v290
    %370 = vmatprep.subr.bf16.mxu0 0
    %371 = vmatpush1.bf16.msra.mxu0 %v287
    %372 = vmatprep.subr.bf16.mxu0 0
    %373 = vmatpush1.bf16.msra.mxu0 %v284
    %374 = vmatprep.subr.bf16.mxu0 0
    %375 = vmatpush1.bf16.msra.mxu0 %v281
    %376 = vmatprep.subr.bf16.mxu0 0
    %377 = vmatpush1.bf16.msra.mxu0 %v278
    %378 = vmatprep.subr.bf16.mxu0 0
    %379 = vmatpush1.bf16.msra.mxu0 %v275
    %380 = vmatprep.subr.bf16.mxu0 0
    %381 = vmatpush1.bf16.msra.mxu0 %v272
    %382 = vmatprep.subr.bf16.mxu0 0
    %383 = vmatpush1.bf16.msra.mxu0 %v269
    %384 = vmatprep.subr.bf16.mxu0 0
    %385 = vmatpush2.bf16.msra.mxu0 0
    %386 = vmatprep.subr.bf16.mxu0 0
    %387 = vmatpush2.bf16.msra.mxu0 0
    %388 = vmatprep.subr.bf16.mxu0 0
    %389 = vmatpush2.bf16.msra.mxu0 0
    %390 = vmatprep.subr.bf16.mxu0 0
    %391 = vmatpush2.bf16.msra.mxu0 0
    %392 = vmatprep.subr.bf16.mxu0 0
    %393 = vmatpush2.bf16.msra.mxu0 0
    %394 = vmatprep.subr.bf16.mxu0 0
    %395 = vmatpush2.bf16.msra.mxu0 0
    %396 = vmatprep.subr.bf16.mxu0 0
    %397 = vmatpush2.bf16.msra.mxu0 0
    %398 = vmatprep.subr.bf16.mxu0 0
    %399 = vmatpush2.bf16.msra.mxu0 0
    %400 = vmatprep.mubr.bf16.mxu0 0
    %401 = vmatmul.mubr.bf16.gmra.mxu0 %v153
    %v402 = vpop.f32.mrf.mxu0
    %v403 = vadd.f32 0.0, %v402
    %v404 = vpop.f32.mrf.mxu0
    %v405 = vpop.f32.mrf.mxu0
    %v406 = vadd.f32 0.0, %v405
    %v407 = vpop.f32.mrf.mxu0
    %408 = vmatprep.mubr.bf16.mxu0 0
    %409 = vmatmul.mubr.bf16.gmra.mxu0 %v154
    %v410 = vpop.f32.mrf.mxu0
    %v411 = vadd.f32 0.0, %v410
    %v412 = vpop.f32.mrf.mxu0
    %v413 = vpop.f32.mrf.mxu0
    %v414 = vadd.f32 0.0, %v413
    %v415 = vpop.f32.mrf.mxu0
    %416 = vdwg.mxu0
    %v417 = vmax.f32 %v350, 0.0
    %v418 = vmax.f32 %v352, 0.0
    %v419 = vmax.f32 %v403, 0.0
    %v420 = vmax.f32 %v354, 0.0
    %v421 = vmax.f32 %v356, 0.0
    %v422 = vmax.f32 %v406, 0.0
    %v423 = vmax.f32 %v360, 0.0
    %v424 = vmax.f32 %v362, 0.0
    %v425 = vmax.f32 %v411, 0.0
    %v426 = vmax.f32 %v364, 0.0
    %v427 = vmax.f32 %v366, 0.0
    %v428 = vmax.f32 %v414, 0.0
    %430 = vset.pattern.permute.xlu0 0
    %431 = vperm.xlu0 %430, %v66
    %v432 = vpop.permute.xlu0 %431
    %435 = vset.pattern.permute.xlu0 0
    %436 = vperm.xlu0 %435, %v67
    %v437 = vpop.permute.xlu0 %436
    %440 = vset.pattern.permute.xlu0 0
    %441 = vperm.xlu0 %440, %v68
    %v442 = vpop.permute.xlu0 %441
    %445 = vset.pattern.permute.xlu0 0
    %446 = vperm.xlu0 %445, %v69
    %v447 = vpop.permute.xlu0 %446
    %v449 = vmul.f32 %v432, %v417
    %v450 = vmul.f32 %v437, %v420
    %v451 = vmul.f32 %v442, %v423
    %v452 = vmul.f32 %v447, %v426
    %453 = vset.pattern.permute.xlu0 1
    %454 = vperm.xlu0 %453, %v66
    %v455 = vpop.permute.xlu0 %454
    %457 = vset.pattern.permute.xlu0 1
    %458 = vperm.xlu0 %457, %v67
    %v459 = vpop.permute.xlu0 %458
    %461 = vset.pattern.permute.xlu0 1
    %462 = vperm.xlu0 %461, %v68
    %v463 = vpop.permute.xlu0 %462
    %465 = vset.pattern.permute.xlu0 1
    %466 = vperm.xlu0 %465, %v69
    %v467 = vpop.permute.xlu0 %466
    %v469 = vmul.f32 %v455, %v418
    %v470 = vmul.f32 %v459, %v421
    %v471 = vmul.f32 %v463, %v424
    %v472 = vmul.f32 %v467, %v427
    %v473 = vadd.f32 %v449, %v469
    %v474 = vadd.f32 %v450, %v470
    %v475 = vadd.f32 %v451, %v471
    %v476 = vadd.f32 %v452, %v472
    %477 = vset.pattern.permute.xlu0 2
    %478 = vperm.xlu0 %477, %v66
    %v479 = vpop.permute.xlu0 %478
    %481 = vset.pattern.permute.xlu0 2
    %482 = vperm.xlu0 %481, %v67
    %v483 = vpop.permute.xlu0 %482
    %485 = vset.pattern.permute.xlu0 2
    %486 = vperm.xlu0 %485, %v68
    %v487 = vpop.permute.xlu0 %486
    %489 = vset.pattern.permute.xlu0 2
    %490 = vperm.xlu0 %489, %v69
    %v491 = vpop.permute.xlu0 %490
    %v493 = vmul.f32 %v479, %v419
    %v494 = vmul.f32 %v483, %v422
    %v495 = vmul.f32 %v487, %v425
    %v496 = vmul.f32 %v491, %v428
    %v497 = vadd.f32 %v473, %v493
    %v498 = vadd.f32 %v474, %v494
    %v499 = vadd.f32 %v475, %v495
    %v500 = vadd.f32 %v476, %v496
    %v501 = vpack.c.bf16 %v498, %v497
    %v502 = vpack.c.bf16 %v500, %v499
    %v504 = vsel %vm97, %v70, 0
    %506 = vmatprep.subr.bf16.mxu0 0
    %507 = vmatpush1.bf16.msra.mxu0 0
    %508 = vmatprep.subr.bf16.mxu0 0
    %509 = vmatpush1.bf16.msra.mxu0 0
    %510 = vmatprep.subr.bf16.mxu0 0
    %511 = vmatpush1.bf16.msra.mxu0 0
    %512 = vmatprep.subr.bf16.mxu0 0
    %513 = vmatpush1.bf16.msra.mxu0 0
    %514 = vmatprep.subr.bf16.mxu0 0
    %515 = vmatpush1.bf16.msra.mxu0 0
    %516 = vmatprep.subr.bf16.mxu0 0
    %517 = vmatpush1.bf16.msra.mxu0 0
    %518 = vmatprep.subr.bf16.mxu0 0
    %519 = vmatpush1.bf16.msra.mxu0 %v502
    %520 = vmatprep.subr.bf16.mxu0 0
    %521 = vmatpush1.bf16.msra.mxu0 %v501
    %522 = vmatprep.subr.bf16.mxu0 0
    %523 = vmatpush2.bf16.msra.mxu0 0
    %524 = vmatprep.subr.bf16.mxu0 0
    %525 = vmatpush2.bf16.msra.mxu0 0
    %526 = vmatprep.subr.bf16.mxu0 0
    %527 = vmatpush2.bf16.msra.mxu0 0
    %528 = vmatprep.subr.bf16.mxu0 0
    %529 = vmatpush2.bf16.msra.mxu0 0
    %530 = vmatprep.subr.bf16.mxu0 0
    %531 = vmatpush2.bf16.msra.mxu0 0
    %532 = vmatprep.subr.bf16.mxu0 0
    %533 = vmatpush2.bf16.msra.mxu0 0
    %534 = vmatprep.subr.bf16.mxu0 0
    %535 = vmatpush2.bf16.msra.mxu0 0
    %536 = vmatprep.subr.bf16.mxu0 0
    %537 = vmatpush2.bf16.msra.mxu0 0
    %538 = vmatprep.mubr.bf16.mxu0 0
    %539 = vmatmul.mubr.bf16.gmra.mxu0 %v504
    %v540 = vpop.f32.mrf.mxu0
    %v541 = vadd.f32 0.0, %v540
    %v542 = vpop.f32.mrf.mxu0
    %v543 = vpop.f32.mrf.mxu0
    %v544 = vpop.f32.mrf.mxu0
    %545 = vdwg.mxu0
    %v546 = vpack.c.bf16 %v541, %v541
    %v547 = vld [vmem:[#allocation5] sm:$0xf]
    %v548 = vld [vmem:[#allocation5 + $0x4] sm:$0xf]
    %v549 = vld [vmem:[#allocation5 + $0x8] sm:$0xf]
    %v550 = vld [vmem:[#allocation5 + $0xc] sm:$0xf]
    %v551 = vld [vmem:[#allocation5 + $0x10] sm:$0xf]
    %v552 = vld [vmem:[#allocation5 + $0x14] sm:$0xf]
    %v553 = vld [vmem:[#allocation5 + $0x18] sm:$0xf]
    %v554 = vld [vmem:[#allocation5 + $0x1c] sm:$0xf]
    %v555 = vld [vmem:[#allocation5 + $0x20] sm:$0xf]
    %v556 = vld [vmem:[#allocation5 + $0x24] sm:$0xf]
    %v557 = vld [vmem:[#allocation5 + $0x28] sm:$0xf]
    %v558 = vld [vmem:[#allocation5 + $0x2c] sm:$0xf]
    %v559 = vld [vmem:[#allocation5 + $0x30] sm:$0xf]
    %v560 = vld [vmem:[#allocation5 + $0x34] sm:$0xf]
    %v561 = vld [vmem:[#allocation5 + $0x38] sm:$0xf]
    %v562 = vld [vmem:[#allocation5 + $0x3c] sm:$0xf]
    %563 = vmatprep.subr.bf16.mxu0 0
    %564 = vmatpush1.bf16.msra.mxu0 0
    %565 = vmatprep.subr.bf16.mxu0 0
    %566 = vmatpush1.bf16.msra.mxu0 0
    %567 = vmatprep.subr.bf16.mxu0 0
    %568 = vmatpush1.bf16.msra.mxu0 0
    %569 = vmatprep.subr.bf16.mxu0 0
    %570 = vmatpush1.bf16.msra.mxu0 0
    %571 = vmatprep.subr.bf16.mxu0 0
    %572 = vmatpush1.bf16.msra.mxu0 0
    %573 = vmatprep.subr.bf16.mxu0 0
    %574 = vmatpush1.bf16.msra.mxu0 0
    %575 = vmatprep.subr.bf16.mxu0 0
    %576 = vmatpush1.bf16.msra.mxu0 %v502
    %577 = vmatprep.subr.bf16.mxu0 0
    %578 = vmatpush1.bf16.msra.mxu0 %v501
    %579 = vmatprep.subr.bf16.mxu0 0
    %580 = vmatpush2.bf16.msra.mxu0 0
    %581 = vmatprep.subr.bf16.mxu0 0
    %582 = vmatpush2.bf16.msra.mxu0 0
    %583 = vmatprep.subr.bf16.mxu0 0
    %584 = vmatpush2.bf16.msra.mxu0 0
    %585 = vmatprep.subr.bf16.mxu0 0
    %586 = vmatpush2.bf16.msra.mxu0 0
    %587 = vmatprep.subr.bf16.mxu0 0
    %588 = vmatpush2.bf16.msra.mxu0 0
    %589 = vmatprep.subr.bf16.mxu0 0
    %590 = vmatpush2.bf16.msra.mxu0 0
    %591 = vmatprep.subr.bf16.mxu0 0
    %592 = vmatpush2.bf16.msra.mxu0 0
    %593 = vmatprep.subr.bf16.mxu0 0
    %594 = vmatpush2.bf16.msra.mxu0 0
    %595 = vmatprep.mubr.bf16.mxu0 0
    %596 = vmatmul.mubr.bf16.gmra.mxu0 %v99
    %v597 = vpop.f32.mrf.mxu0
    %v598 = vadd.f32 0.0, %v597
    %v599 = vpop.f32.mrf.mxu0
    %v600 = vpop.f32.mrf.mxu0
    %v601 = vadd.f32 0.0, %v600
    %v602 = vpop.f32.mrf.mxu0
    %603 = vmatprep.mubr.bf16.mxu0 0
    %604 = vmatmul.mubr.bf16.gmra.mxu0 %v102
    %v605 = vpop.f32.mrf.mxu0
    %v606 = vadd.f32 0.0, %v605
    %v607 = vpop.f32.mrf.mxu0
    %v608 = vpop.f32.mrf.mxu0
    %v609 = vadd.f32 0.0, %v608
    %v610 = vpop.f32.mrf.mxu0
    %611 = vdwg.mxu0
    %v612 = vpack.c.bf16 %v601, %v598
    %v613 = vpack.c.bf16 %v609, %v606
    %s614 = scalar_lea.vmem [#allocation2], 192
    %v615 = vld [vmem:[%s614] sm:$0xff]
    %v616 = vld [vmem:[%s614 + $0x8] sm:$0xf]
    %v617 = vld [vmem:[%s614 + $0xc] sm:$0xff]
    %v618 = vld [vmem:[%s614 + $0x14] sm:$0xf]
    %v619 = vld [vmem:[%s614 + $0x18] sm:$0xff]
    %v620 = vld [vmem:[%s614 + $0x20] sm:$0xf]
    %v621 = vld [vmem:[%s614 + $0x24] sm:$0xff]
    %v622 = vld [vmem:[%s614 + $0x2c] sm:$0xf]
    %v623 = vld [vmem:[%s614 + $0x30] sm:$0xff]
    %v624 = vld [vmem:[%s614 + $0x38] sm:$0xf]
    %v625 = vld [vmem:[%s614 + $0x3c] sm:$0xff]
    %v626 = vld [vmem:[%s614 + $0x44] sm:$0xf]
    %v627 = vld [vmem:[%s614 + $0x48] sm:$0xff]
    %v628 = vld [vmem:[%s614 + $0x50] sm:$0xf]
    %v629 = vld [vmem:[%s614 + $0x54] sm:$0xff]
    %v630 = vld [vmem:[%s614 + $0x5c] sm:$0xf]
    %v631 = vld [vmem:[%s614 + $0x60] sm:$0xff]
    %v632 = vld [vmem:[%s614 + $0x68] sm:$0xf]
    %v633 = vld [vmem:[%s614 + $0x6c] sm:$0xff]
    %v634 = vld [vmem:[%s614 + $0x74] sm:$0xf]
    %v635 = vld [vmem:[%s614 + $0x78] sm:$0xff]
    %v636 = vld [vmem:[%s614 + $0x80] sm:$0xf]
    %v637 = vld [vmem:[%s614 + $0x84] sm:$0xff]
    %v638 = vld [vmem:[%s614 + $0x8c] sm:$0xf]
    %v639 = vld [vmem:[%s614 + $0x90] sm:$0xff]
    %v640 = vld [vmem:[%s614 + $0x98] sm:$0xf]
    %v641 = vld [vmem:[%s614 + $0x9c] sm:$0xff]
    %v642 = vld [vmem:[%s614 + $0xa4] sm:$0xf]
    %v643 = vld [vmem:[%s614 + $0xa8] sm:$0xff]
    %v644 = vld [vmem:[%s614 + $0xb0] sm:$0xf]
    %v645 = vld [vmem:[%s614 + $0xb4] sm:$0xff]
    %v646 = vld [vmem:[%s614 + $0xbc] sm:$0xf]
    %v679 = vunpack.c.l.b16 %v615
    %v680 = vunpack.c.h.b16 %v615
    %v681 = vunpack.c.l.b16 %v616
    %v682 = vunpack.c.l.b16 %v617
    %v683 = vunpack.c.h.b16 %v617
    %v684 = vunpack.c.l.b16 %v618
    %v685 = vunpack.c.l.b16 %v619
    %v686 = vunpack.c.h.b16 %v619
    %v687 = vunpack.c.l.b16 %v620
    %v688 = vunpack.c.l.b16 %v621
    %v689 = vunpack.c.h.b16 %v621
    %v690 = vunpack.c.l.b16 %v622
    %v691 = vunpack.c.l.b16 %v623
    %v692 = vunpack.c.h.b16 %v623
    %v693 = vunpack.c.l.b16 %v624
    %v694 = vunpack.c.l.b16 %v625
    %v695 = vunpack.c.h.b16 %v625
    %v696 = vunpack.c.l.b16 %v626
    %v697 = vunpack.c.l.b16 %v627
    %v698 = vunpack.c.h.b16 %v627
    %v699 = vunpack.c.l.b16 %v628
    %v700 = vunpack.c.l.b16 %v629
    %v701 = vunpack.c.h.b16 %v629
    %v702 = vunpack.c.l.b16 %v630
    %v703 = vunpack.c.l.b16 %v631
    %v704 = vunpack.c.h.b16 %v631
    %v705 = vunpack.c.l.b16 %v632
    %v706 = vunpack.c.l.b16 %v633
    %v707 = vunpack.c.h.b16 %v633
    %v708 = vunpack.c.l.b16 %v634
    %v709 = vunpack.c.l.b16 %v635
    %v710 = vunpack.c.h.b16 %v635
    %v711 = vunpack.c.l.b16 %v636
    %v712 = vunpack.c.l.b16 %v637
    %v713 = vunpack.c.h.b16 %v637
    %v714 = vunpack.c.l.b16 %v638
    %v715 = vunpack.c.l.b16 %v639
    %v716 = vunpack.c.h.b16 %v639
    %v717 = vunpack.c.l.b16 %v640
    %v718 = vunpack.c.l.b16 %v641
    %v719 = vunpack.c.h.b16 %v641
    %v720 = vunpack.c.l.b16 %v642
    %v721 = vunpack.c.l.b16 %v643
    %v722 = vunpack.c.h.b16 %v643
    %v723 = vunpack.c.l.b16 %v644
    %v724 = vunpack.c.l.b16 %v645
    %v725 = vunpack.c.h.b16 %v645
    %v726 = vunpack.c.l.b16 %v646
    %v727 = vpack.c.b16 %v682, %v679
    %v728 = vpack.c.b16 %v683, %v680
    %v729 = vpack.c.b16 %v684, %v681
    %v730 = vpack.c.b16 %v688, %v685
    %v731 = vpack.c.b16 %v689, %v686
    %v732 = vpack.c.b16 %v690, %v687
    %v733 = vpack.c.b16 %v694, %v691
    %v734 = vpack.c.b16 %v695, %v692
    %v735 = vpack.c.b16 %v696, %v693
    %v736 = vpack.c.b16 %v700, %v697
    %v737 = vpack.c.b16 %v701, %v698
    %v738 = vpack.c.b16 %v702, %v699
    %v739 = vpack.c.b16 %v706, %v703
    %v740 = vpack.c.b16 %v707, %v704
    %v741 = vpack.c.b16 %v708, %v705
    %v742 = vpack.c.b16 %v712, %v709
    %v743 = vpack.c.b16 %v713, %v710
    %v744 = vpack.c.b16 %v714, %v711
    %v745 = vpack.c.b16 %v718, %v715
    %v746 = vpack.c.b16 %v719, %v716
    %v747 = vpack.c.b16 %v720, %v717
    %v748 = vpack.c.b16 %v724, %v721
    %v749 = vpack.c.b16 %v725, %v722
    %v750 = vpack.c.b16 %v726, %v723
    %775 = vmatprep.subr.bf16.mxu0 %v749
    %776 = vmatpush1.bf16.msra.mxu0 %v748
    %777 = vmatprep.subr.bf16.mxu0 %v746
    %778 = vmatpush1.bf16.msra.mxu0 %v745
    %779 = vmatprep.subr.bf16.mxu0 %v743
    %780 = vmatpush1.bf16.msra.mxu0 %v742
    %781 = vmatprep.subr.bf16.mxu0 %v740
    %782 = vmatpush1.bf16.msra.mxu0 %v739
    %783 = vmatprep.subr.bf16.mxu0 %v737
    %784 = vmatpush1.bf16.msra.mxu0 %v736
    %785 = vmatprep.subr.bf16.mxu0 %v734
    %786 = vmatpush1.bf16.msra.mxu0 %v733
    %787 = vmatprep.subr.bf16.mxu0 %v731
    %788 = vmatpush1.bf16.msra.mxu0 %v730
    %789 = vmatprep.subr.bf16.mxu0 %v728
    %790 = vmatpush1.bf16.msra.mxu0 %v727
    %791 = vmatprep.subr.bf16.mxu0 0
    %792 = vmatpush2.bf16.msra.mxu0 0
    %793 = vmatprep.subr.bf16.mxu0 0
    %794 = vmatpush2.bf16.msra.mxu0 0
    %795 = vmatprep.subr.bf16.mxu0 0
    %796 = vmatpush2.bf16.msra.mxu0 0
    %797 = vmatprep.subr.bf16.mxu0 0
    %798 = vmatpush2.bf16.msra.mxu0 0
    %799 = vmatprep.subr.bf16.mxu0 0
    %800 = vmatpush2.bf16.msra.mxu0 0
    %801 = vmatprep.subr.bf16.mxu0 0
    %802 = vmatpush2.bf16.msra.mxu0 0
    %803 = vmatprep.subr.bf16.mxu0 0
    %804 = vmatpush2.bf16.msra.mxu0 0
    %805 = vmatprep.subr.bf16.mxu0 0
    %806 = vmatpush2.bf16.msra.mxu0 0
    %807 = vmatprep.mubr.bf16.mxu0 0
    %808 = vmatmul.mubr.bf16.gmra.mxu0 %v612
    %v809 = vpop.f32.mrf.mxu0
    %v810 = vadd.f32 0.0, %v809
    %v811 = vpop.f32.mrf.mxu0
    %v812 = vadd.f32 0.0, %v811
    %v813 = vpop.f32.mrf.mxu0
    %v814 = vadd.f32 0.0, %v813
    %v815 = vpop.f32.mrf.mxu0
    %v816 = vadd.f32 0.0, %v815
    %817 = vmatprep.mubr.bf16.mxu0 0
    %818 = vmatmul.mubr.bf16.gmra.mxu0 %v613
    %v819 = vpop.f32.mrf.mxu0
    %v820 = vadd.f32 0.0, %v819
    %v821 = vpop.f32.mrf.mxu0
    %v822 = vadd.f32 0.0, %v821
    %v823 = vpop.f32.mrf.mxu0
    %v824 = vadd.f32 0.0, %v823
    %v825 = vpop.f32.mrf.mxu0
    %v826 = vadd.f32 0.0, %v825
    %827 = vdwg.mxu0
    %828 = vmatprep.subr.bf16.mxu0 0
    %829 = vmatpush1.bf16.msra.mxu0 %v750
    %830 = vmatprep.subr.bf16.mxu0 0
    %831 = vmatpush1.bf16.msra.mxu0 %v747
    %832 = vmatprep.subr.bf16.mxu0 0
    %833 = vmatpush1.bf16.msra.mxu0 %v744
    %834 = vmatprep.subr.bf16.mxu0 0
    %835 = vmatpush1.bf16.msra.mxu0 %v741
    %836 = vmatprep.subr.bf16.mxu0 0
    %837 = vmatpush1.bf16.msra.mxu0 %v738
    %838 = vmatprep.subr.bf16.mxu0 0
    %839 = vmatpush1.bf16.msra.mxu0 %v735
    %840 = vmatprep.subr.bf16.mxu0 0
    %841 = vmatpush1.bf16.msra.mxu0 %v732
    %842 = vmatprep.subr.bf16.mxu0 0
    %843 = vmatpush1.bf16.msra.mxu0 %v729
    %844 = vmatprep.subr.bf16.mxu0 0
    %845 = vmatpush2.bf16.msra.mxu0 0
    %846 = vmatprep.subr.bf16.mxu0 0
    %847 = vmatpush2.bf16.msra.mxu0 0
    %848 = vmatprep.subr.bf16.mxu0 0
    %849 = vmatpush2.bf16.msra.mxu0 0
    %850 = vmatprep.subr.bf16.mxu0 0
    %851 = vmatpush2.bf16.msra.mxu0 0
    %852 = vmatprep.subr.bf16.mxu0 0
    %853 = vmatpush2.bf16.msra.mxu0 0
    %854 = vmatprep.subr.bf16.mxu0 0
    %855 = vmatpush2.bf16.msra.mxu0 0
    %856 = vmatprep.subr.bf16.mxu0 0
    %857 = vmatpush2.bf16.msra.mxu0 0
    %858 = vmatprep.subr.bf16.mxu0 0
    %859 = vmatpush2.bf16.msra.mxu0 0
    %860 = vmatprep.mubr.bf16.mxu0 0
    %861 = vmatmul.mubr.bf16.gmra.mxu0 %v612
    %v862 = vpop.f32.mrf.mxu0
    %v863 = vadd.f32 0.0, %v862
    %v864 = vpop.f32.mrf.mxu0
    %v865 = vpop.f32.mrf.mxu0
    %v866 = vadd.f32 0.0, %v865
    %v867 = vpop.f32.mrf.mxu0
    %868 = vmatprep.mubr.bf16.mxu0 0
    %869 = vmatmul.mubr.bf16.gmra.mxu0 %v613
    %v870 = vpop.f32.mrf.mxu0
    %v871 = vadd.f32 0.0, %v870
    %v872 = vpop.f32.mrf.mxu0
    %v873 = vpop.f32.mrf.mxu0
    %v874 = vadd.f32 0.0, %v873
    %v875 = vpop.f32.mrf.mxu0
    %876 = vdwg.mxu0
    %v877 = vmax.f32 %v810, 0.0
    %v878 = vmax.f32 %v812, 0.0
    %v879 = vmax.f32 %v863, 0.0
    %v880 = vmax.f32 %v814, 0.0
    %v881 = vmax.f32 %v816, 0.0
    %v882 = vmax.f32 %v866, 0.0
    %v883 = vmax.f32 %v820, 0.0
    %v884 = vmax.f32 %v822, 0.0
    %v885 = vmax.f32 %v871, 0.0
    %v886 = vmax.f32 %v824, 0.0
    %v887 = vmax.f32 %v826, 0.0
    %v888 = vmax.f32 %v874, 0.0
    %v889 = vmul.f32 %v432, %v877
    %v890 = vmul.f32 %v437, %v880
    %v891 = vmul.f32 %v442, %v883
    %v892 = vmul.f32 %v447, %v886
    %v893 = vmul.f32 %v455, %v878
    %v894 = vmul.f32 %v459, %v881
    %v895 = vmul.f32 %v463, %v884
    %v896 = vmul.f32 %v467, %v887
    %v897 = vadd.f32 %v889, %v893
    %v898 = vadd.f32 %v890, %v894
    %v899 = vadd.f32 %v891, %v895
    %v900 = vadd.f32 %v892, %v896
    %v901 = vmul.f32 %v479, %v879
    %v902 = vmul.f32 %v483, %v882
    %v903 = vmul.f32 %v487, %v885
    %v904 = vmul.f32 %v491, %v888
    %v905 = vadd.f32 %v897, %v901
    %v906 = vadd.f32 %v898, %v902
    %v907 = vadd.f32 %v899, %v903
    %v908 = vadd.f32 %v900, %v904
    %v909 = vpack.c.bf16 %v906, %v905
    %v910 = vpack.c.bf16 %v908, %v907
    %911 = vmatprep.subr.bf16.mxu0 0
    %912 = vmatpush1.bf16.msra.mxu0 0
    %913 = vmatprep.subr.bf16.mxu0 0
    %914 = vmatpush1.bf16.msra.mxu0 0
    %915 = vmatprep.subr.bf16.mxu0 0
    %916 = vmatpush1.bf16.msra.mxu0 0
    %917 = vmatprep.subr.bf16.mxu0 0
    %918 = vmatpush1.bf16.msra.mxu0 0
    %919 = vmatprep.subr.bf16.mxu0 0
    %920 = vmatpush1.bf16.msra.mxu0 0
    %921 = vmatprep.subr.bf16.mxu0 0
    %922 = vmatpush1.bf16.msra.mxu0 0
    %923 = vmatprep.subr.bf16.mxu0 0
    %924 = vmatpush1.bf16.msra.mxu0 %v910
    %925 = vmatprep.subr.bf16.mxu0 0
    %926 = vmatpush1.bf16.msra.mxu0 %v909
    %927 = vmatprep.subr.bf16.mxu0 0
    %928 = vmatpush2.bf16.msra.mxu0 0
    %929 = vmatprep.subr.bf16.mxu0 0
    %930 = vmatpush2.bf16.msra.mxu0 0
    %931 = vmatprep.subr.bf16.mxu0 0
    %932 = vmatpush2.bf16.msra.mxu0 0
    %933 = vmatprep.subr.bf16.mxu0 0
    %934 = vmatpush2.bf16.msra.mxu0 0
    %935 = vmatprep.subr.bf16.mxu0 0
    %936 = vmatpush2.bf16.msra.mxu0 0
    %937 = vmatprep.subr.bf16.mxu0 0
    %938 = vmatpush2.bf16.msra.mxu0 0
    %939 = vmatprep.subr.bf16.mxu0 0
    %940 = vmatpush2.bf16.msra.mxu0 0
    %941 = vmatprep.subr.bf16.mxu0 0
    %942 = vmatpush2.bf16.msra.mxu0 0
    %943 = vmatprep.mubr.bf16.mxu0 0
    %944 = vmatmul.mubr.bf16.gmra.mxu0 %v504
    %v945 = vpop.f32.mrf.mxu0
    %v946 = vadd.f32 0.0, %v945
    %v947 = vpop.f32.mrf.mxu0
    %v948 = vpop.f32.mrf.mxu0
    %v949 = vpop.f32.mrf.mxu0
    %950 = vdwg.mxu0
    %v951 = vpack.c.bf16 %v946, %v946
    %s952 = scalar_lea.vmem [#allocation5], 64
    %v953 = vld [vmem:[%s952] sm:$0xf]
    %v954 = vld [vmem:[%s952 + $0x4] sm:$0xf]
    %v955 = vld [vmem:[%s952 + $0x8] sm:$0xf]
    %v956 = vld [vmem:[%s952 + $0xc] sm:$0xf]
    %v957 = vld [vmem:[%s952 + $0x10] sm:$0xf]
    %v958 = vld [vmem:[%s952 + $0x14] sm:$0xf]
    %v959 = vld [vmem:[%s952 + $0x18] sm:$0xf]
    %v960 = vld [vmem:[%s952 + $0x1c] sm:$0xf]
    %v961 = vld [vmem:[%s952 + $0x20] sm:$0xf]
    %v962 = vld [vmem:[%s952 + $0x24] sm:$0xf]
    %v963 = vld [vmem:[%s952 + $0x28] sm:$0xf]
    %v964 = vld [vmem:[%s952 + $0x2c] sm:$0xf]
    %v965 = vld [vmem:[%s952 + $0x30] sm:$0xf]
    %v966 = vld [vmem:[%s952 + $0x34] sm:$0xf]
    %v967 = vld [vmem:[%s952 + $0x38] sm:$0xf]
    %v968 = vld [vmem:[%s952 + $0x3c] sm:$0xf]
    %v985 = vunpack.c.l.b16 %v953
    %v986 = vunpack.c.l.b16 %v954
    %v987 = vunpack.c.l.b16 %v955
    %v988 = vunpack.c.l.b16 %v956
    %v989 = vunpack.c.l.b16 %v957
    %v990 = vunpack.c.l.b16 %v958
    %v991 = vunpack.c.l.b16 %v959
    %v992 = vunpack.c.l.b16 %v960
    %v993 = vunpack.c.l.b16 %v961
    %v994 = vunpack.c.l.b16 %v962
    %v995 = vunpack.c.l.b16 %v963
    %v996 = vunpack.c.l.b16 %v964
    %v997 = vunpack.c.l.b16 %v965
    %v998 = vunpack.c.l.b16 %v966
    %v999 = vunpack.c.l.b16 %v967
    %v1000 = vunpack.c.l.b16 %v968
    %v1001 = vpack.c.b16 %v986, %v985
    %v1002 = vpack.c.b16 %v988, %v987
    %v1003 = vpack.c.b16 %v990, %v989
    %v1004 = vpack.c.b16 %v992, %v991
    %v1005 = vpack.c.b16 %v994, %v993
    %v1006 = vpack.c.b16 %v996, %v995
    %v1007 = vpack.c.b16 %v998, %v997
    %v1008 = vpack.c.b16 %v1000, %v999
    %1017 = vmatprep.subr.bf16.mxu0 0
    %1018 = vmatpush1.bf16.msra.mxu0 %v1008
    %1019 = vmatprep.subr.bf16.mxu0 0
    %1020 = vmatpush1.bf16.msra.mxu0 %v1007
    %1021 = vmatprep.subr.bf16.mxu0 0
    %1022 = vmatpush1.bf16.msra.mxu0 %v1006
    %1023 = vmatprep.subr.bf16.mxu0 0
    %1024 = vmatpush1.bf16.msra.mxu0 %v1005
    %1025 = vmatprep.subr.bf16.mxu0 0
    %1026 = vmatpush1.bf16.msra.mxu0 %v1004
    %1027 = vmatprep.subr.bf16.mxu0 0
    %1028 = vmatpush1.bf16.msra.mxu0 %v1003
    %1029 = vmatprep.subr.bf16.mxu0 0
    %1030 = vmatpush1.bf16.msra.mxu0 %v1002
    %1031 = vmatprep.subr.bf16.mxu0 0
    %1032 = vmatpush1.bf16.msra.mxu0 %v1001
    %1033 = vmatprep.subr.bf16.mxu0 0
    %1034 = vmatpush2.bf16.msra.mxu0 0
    %1035 = vmatprep.subr.bf16.mxu0 0
    %1036 = vmatpush2.bf16.msra.mxu0 0
    %1037 = vmatprep.subr.bf16.mxu0 0
    %1038 = vmatpush2.bf16.msra.mxu0 0
    %1039 = vmatprep.subr.bf16.mxu0 0
    %1040 = vmatpush2.bf16.msra.mxu0 0
    %1041 = vmatprep.subr.bf16.mxu0 0
    %1042 = vmatpush2.bf16.msra.mxu0 0
    %1043 = vmatprep.subr.bf16.mxu0 0
    %1044 = vmatpush2.bf16.msra.mxu0 0
    %1045 = vmatprep.subr.bf16.mxu0 0
    %1046 = vmatpush2.bf16.msra.mxu0 0
    %1047 = vmatprep.subr.bf16.mxu0 0
    %1048 = vmatpush2.bf16.msra.mxu0 0
    %1049 = vmatprep.mubr.bf16.mxu0 0
    %1050 = vmatmul.mubr.bf16.gmra.mxu0 %v951
    %v1051 = vpop.f32.mrf.mxu0
    %v1052 = vadd.f32 0.0, %v1051
    %v1053 = vpop.f32.mrf.mxu0
    %v1054 = vpop.f32.mrf.mxu0
    %v1055 = vpop.f32.mrf.mxu0
    %1056 = vdwg.mxu0
    %v1073 = vunpack.c.l.b16 %v547
    %v1074 = vunpack.c.l.b16 %v548
    %v1075 = vunpack.c.l.b16 %v549
    %v1076 = vunpack.c.l.b16 %v550
    %v1077 = vunpack.c.l.b16 %v551
    %v1078 = vunpack.c.l.b16 %v552
    %v1079 = vunpack.c.l.b16 %v553
    %v1080 = vunpack.c.l.b16 %v554
    %v1081 = vunpack.c.l.b16 %v555
    %v1082 = vunpack.c.l.b16 %v556
    %v1083 = vunpack.c.l.b16 %v557
    %v1084 = vunpack.c.l.b16 %v558
    %v1085 = vunpack.c.l.b16 %v559
    %v1086 = vunpack.c.l.b16 %v560
    %v1087 = vunpack.c.l.b16 %v561
    %v1088 = vunpack.c.l.b16 %v562
    %v1089 = vpack.c.b16 %v1074, %v1073
    %v1090 = vpack.c.b16 %v1076, %v1075
    %v1091 = vpack.c.b16 %v1078, %v1077
    %v1092 = vpack.c.b16 %v1080, %v1079
    %v1093 = vpack.c.b16 %v1082, %v1081
    %v1094 = vpack.c.b16 %v1084, %v1083
    %v1095 = vpack.c.b16 %v1086, %v1085
    %v1096 = vpack.c.b16 %v1088, %v1087
    %1105 = vmatprep.subr.bf16.mxu0 0
    %1106 = vmatpush1.bf16.msra.mxu0 %v1096
    %1107 = vmatprep.subr.bf16.mxu0 0
    %1108 = vmatpush1.bf16.msra.mxu0 %v1095
    %1109 = vmatprep.subr.bf16.mxu0 0
    %1110 = vmatpush1.bf16.msra.mxu0 %v1094
    %1111 = vmatprep.subr.bf16.mxu0 0
    %1112 = vmatpush1.bf16.msra.mxu0 %v1093
    %1113 = vmatprep.subr.bf16.mxu0 0
    %1114 = vmatpush1.bf16.msra.mxu0 %v1092
    %1115 = vmatprep.subr.bf16.mxu0 0
    %1116 = vmatpush1.bf16.msra.mxu0 %v1091
    %1117 = vmatprep.subr.bf16.mxu0 0
    %1118 = vmatpush1.bf16.msra.mxu0 %v1090
    %1119 = vmatprep.subr.bf16.mxu0 0
    %1120 = vmatpush1.bf16.msra.mxu0 %v1089
    %1121 = vmatprep.subr.bf16.mxu0 0
    %1122 = vmatpush2.bf16.msra.mxu0 0
    %1123 = vmatprep.subr.bf16.mxu0 0
    %1124 = vmatpush2.bf16.msra.mxu0 0
    %1125 = vmatprep.subr.bf16.mxu0 0
    %1126 = vmatpush2.bf16.msra.mxu0 0
    %1127 = vmatprep.subr.bf16.mxu0 0
    %1128 = vmatpush2.bf16.msra.mxu0 0
    %1129 = vmatprep.subr.bf16.mxu0 0
    %1130 = vmatpush2.bf16.msra.mxu0 0
    %1131 = vmatprep.subr.bf16.mxu0 0
    %1132 = vmatpush2.bf16.msra.mxu0 0
    %1133 = vmatprep.subr.bf16.mxu0 0
    %1134 = vmatpush2.bf16.msra.mxu0 0
    %1135 = vmatprep.subr.bf16.mxu0 0
    %1136 = vmatpush2.bf16.msra.mxu0 0
    %1137 = vmatprep.mubr.bf16.mxu0 0
    %1138 = vmatmul.mubr.bf16.gmra.mxu0 %v546
    %v1139 = vpop.f32.mrf.mxu0
    %v1140 = vadd.f32 %v1052, %v1139
    %v1141 = vpop.f32.mrf.mxu0
    %v1142 = vpop.f32.mrf.mxu0
    %v1143 = vpop.f32.mrf.mxu0
    %1144 = vdwg.mxu0
    %v1145 = vld [vmem:[%s6] sm:$0x1]
    %v1147 = vlaneseq
    %v1148 = vshrl.u32 %v1147, 7
    %v1149 = vsub.s32 0, %v1148
    %v1150 = vrot.slane %v1145, %v1149
    %v1152 = vadd.f32 %v1140, %v1150
    %v1153 = vmax.f32 %v1152, 0.0
    %v1154 = vpack.c.bf16 %v1153, %v1153
    %v1155 = vld [vmem:[%s7] sm:$0xf]
    %v1156 = vld [vmem:[%s7 + $0x4] sm:$0xf]
    %v1157 = vld [vmem:[%s7 + $0x8] sm:$0xf]
    %v1158 = vld [vmem:[%s7 + $0xc] sm:$0xf]
    %v1159 = vld [vmem:[%s7 + $0x10] sm:$0xf]
    %v1160 = vld [vmem:[%s7 + $0x14] sm:$0xf]
    %v1161 = vld [vmem:[%s7 + $0x18] sm:$0xf]
    %v1162 = vld [vmem:[%s7 + $0x1c] sm:$0xf]
    %v1163 = vld [vmem:[%s7 + $0x20] sm:$0xf]
    %v1164 = vld [vmem:[%s7 + $0x24] sm:$0xf]
    %v1165 = vld [vmem:[%s7 + $0x28] sm:$0xf]
    %v1166 = vld [vmem:[%s7 + $0x2c] sm:$0xf]
    %v1167 = vld [vmem:[%s7 + $0x30] sm:$0xf]
    %v1168 = vld [vmem:[%s7 + $0x34] sm:$0xf]
    %v1169 = vld [vmem:[%s7 + $0x38] sm:$0xf]
    %v1170 = vld [vmem:[%s7 + $0x3c] sm:$0xf]
    %v1171 = vld [vmem:[%s8] sm:$0x1]
    %v1173 = vlaneseq
    %v1174 = vshrl.u32 %v1173, 7
    %v1175 = vsub.s32 0, %v1174
    %v1176 = vrot.slane %v1171, %v1175
    %v1194 = vunpack.c.l.b16 %v1155
    %v1195 = vunpack.c.l.b16 %v1156
    %v1196 = vunpack.c.l.b16 %v1157
    %v1197 = vunpack.c.l.b16 %v1158
    %v1198 = vunpack.c.l.b16 %v1159
    %v1199 = vunpack.c.l.b16 %v1160
    %v1200 = vunpack.c.l.b16 %v1161
    %v1201 = vunpack.c.l.b16 %v1162
    %v1202 = vunpack.c.l.b16 %v1163
    %v1203 = vunpack.c.l.b16 %v1164
    %v1204 = vunpack.c.l.b16 %v1165
    %v1205 = vunpack.c.l.b16 %v1166
    %v1206 = vunpack.c.l.b16 %v1167
    %v1207 = vunpack.c.l.b16 %v1168
    %v1208 = vunpack.c.l.b16 %v1169
    %v1209 = vunpack.c.l.b16 %v1170
    %v1210 = vpack.c.b16 %v1195, %v1194
    %v1211 = vpack.c.b16 %v1197, %v1196
    %v1212 = vpack.c.b16 %v1199, %v1198
    %v1213 = vpack.c.b16 %v1201, %v1200
    %v1214 = vpack.c.b16 %v1203, %v1202
    %v1215 = vpack.c.b16 %v1205, %v1204
    %v1216 = vpack.c.b16 %v1207, %v1206
    %v1217 = vpack.c.b16 %v1209, %v1208
    %1226 = vmatprep.subr.bf16.mxu0 0
    %1227 = vmatpush1.bf16.msra.mxu0 %v1217
    %1228 = vmatprep.subr.bf16.mxu0 0
    %1229 = vmatpush1.bf16.msra.mxu0 %v1216
    %1230 = vmatprep.subr.bf16.mxu0 0
    %1231 = vmatpush1.bf16.msra.mxu0 %v1215
    %1232 = vmatprep.subr.bf16.mxu0 0
    %1233 = vmatpush1.bf16.msra.mxu0 %v1214
    %1234 = vmatprep.subr.bf16.mxu0 0
    %1235 = vmatpush1.bf16.msra.mxu0 %v1213
    %1236 = vmatprep.subr.bf16.mxu0 0
    %1237 = vmatpush1.bf16.msra.mxu0 %v1212
    %1238 = vmatprep.subr.bf16.mxu0 0
    %1239 = vmatpush1.bf16.msra.mxu0 %v1211
    %1240 = vmatprep.subr.bf16.mxu0 0
    %1241 = vmatpush1.bf16.msra.mxu0 %v1210
    %1242 = vmatprep.subr.bf16.mxu0 0
    %1243 = vmatpush2.bf16.msra.mxu0 0
    %1244 = vmatprep.subr.bf16.mxu0 0
    %1245 = vmatpush2.bf16.msra.mxu0 0
    %1246 = vmatprep.subr.bf16.mxu0 0
    %1247 = vmatpush2.bf16.msra.mxu0 0
    %1248 = vmatprep.subr.bf16.mxu0 0
    %1249 = vmatpush2.bf16.msra.mxu0 0
    %1250 = vmatprep.subr.bf16.mxu0 0
    %1251 = vmatpush2.bf16.msra.mxu0 0
    %1252 = vmatprep.subr.bf16.mxu0 0
    %1253 = vmatpush2.bf16.msra.mxu0 0
    %1254 = vmatprep.subr.bf16.mxu0 0
    %1255 = vmatpush2.bf16.msra.mxu0 0
    %1256 = vmatprep.subr.bf16.mxu0 0
    %1257 = vmatpush2.bf16.msra.mxu0 0
    %1258 = vmatprep.mubr.bf16.mxu0 0
    %1259 = vmatmul.mubr.bf16.gmra.mxu0 %v1154
    %v1260 = vpop.f32.mrf.mxu0
    %v1261 = vadd.f32 %v1176, %v1260
    %v1262 = vpop.f32.mrf.mxu0
    %v1263 = vpop.f32.mrf.mxu0
    %v1264 = vpop.f32.mrf.mxu0
    %1265 = vdwg.mxu0
    %vm1266 = vcmask 58368
    %1267 = vst.msk [vmem:[#allocation7] sm:$0x3] %vm1266, %v1261
    // Predicated region
    $region46: #{tpu_custom_call.1} parent=1 // pred_check
      _
    $region47: #{tpu_custom_call.1} parent=1 // pred_check_branch
      %1269 = sbr.rel (0) target = $region49
    $region48: #{tpu_custom_call.1} parent=1 // pred_region
      %s1271 = ssub.s32 32, 32
      %1272 = vsyncadd [#allocation4], %s1271
      %s1274 = sshll.u32 [#allocation7], 4
      %s1275 = int_to_ptr.vmem [resolvable:$true] %s1274
      %1277 = dma.vmem_to_hbm [thread:$0]  %s1275, 32, %s9, [#allocation4]
    $region49: #{tpu_custom_call.1} parent=1 // pred_fallthru
      _
    // Predicated region
    $region50: #{tpu_custom_call.1} parent=1 // pred_check
      _
    $region51: #{tpu_custom_call.1} parent=1 // pred_check_branch
      %1279 = sbr.rel (0) target = $region53
    $region52: #{tpu_custom_call.1} parent=1 // pred_region
      %1280 = dma.done [#allocation4], 32
    $region53: #{tpu_custom_call.1} parent=1 // pred_fallthru
      _
    %1281 = vsyncpa [#allocation3], 1
    %1282 = vsyncpa [#allocation6], 1
    %1283 = vsyncpa [#allocation4], 1

</llo_original>
